<compile_context>
chip_gen: v6e
topology: v6e:2x2x1
jax: 0.10.0
libtpu: 0.0.40
codegen_flags: <defaults>
</compile_context>

<pallas_src>
import jax
import jax.numpy as jnp
from jax.experimental import pallas as pl
from jax.experimental.pallas import tpu as pltpu

# ---------------- model hyper-parameters (the "args" of SkipHashingMemory) ----------------
INPUT_DIM      = 64    # input_dim
COMPRESSED_DIM = 32    # compressed_dim (value dim of the memory)
HEADS          = 2     # args.mem_heads
K_DIM          = 32    # args.mem_k_dim  (query dim per head, split into two halves)
KNN            = 4     # args.mem_knn
N_KEYS         = 16    # args.mem_n_keys (per half)  -> memory size = N_KEYS**2
MEM_SIZE       = N_KEYS * N_KEYS


# ---------------------------------- fused Pallas kernel -----------------------------------
def _fused_shm_kernel(x_ref, wc_ref, bc_ref, vr_ref, br_ref, o_ref):
    """One row-tile of the full SkipHashingMemory forward.

    x_ref  : (TM, D)           f32  input rows (also used for the residual)
    wc_ref : (D, HEADS*MEM)    f32  folded query-proj x subkeys cartesian weight
    bc_ref : (1, HEADS*MEM)    f32  folded bias
    vr_ref : (MEM, D)          f32  folded values @ Wr (readout + reproj in one weight)
    br_ref : (1, D)            f32  reproj bias
    o_ref  : (TM, D)           f32  output
    """
    x = x_ref[...]

    # fused query projection + per-half subkey scoring + cartesian sum: one MXU matmul
    s_all = jnp.dot(x, wc_ref[...], preferred_element_type=jnp.float32) + bc_ref[...]

    tm = x.shape[0]
    mem_size = vr_ref.shape[0]
    neg = jnp.float32(-1e30)
    vr = vr_ref[...]

    # residual + reproj bias
    y = x + br_ref[...]

    for h in range(HEADS):                                   # HEADS is small & static
        s = s_all[:, h * mem_size:(h + 1) * mem_size]         # (TM, MEM) f32

        # Fused top-KNN + softmax: pass t's per-row max is the picked score, so its
        # softmax numerator is exp(m_t - m_1). One cross-lane reduce per pass; exact
        # float ties are all picked in the same pass (reference exact only up to ties).
        work = s
        m_1 = jnp.max(work, axis=-1, keepdims=True)           # (TM, 1)
        pick = work == m_1
        w_unnorm = pick.astype(jnp.float32)                   # exp(0) = 1
        denom = jnp.ones((tm, 1), jnp.float32)
        work = jnp.where(pick, neg, work)
        for _ in range(KNN - 1):
            m_t = jnp.max(work, axis=-1, keepdims=True)        # (TM, 1)
            e_t = jnp.exp(m_t - m_1)                           # (TM, 1) EUP, tiny
            pick = work == m_t
            w_unnorm = w_unnorm + pick.astype(jnp.float32) * e_t
            denom = denom + e_t
            work = jnp.where(pick, neg, work)

        # EmbeddingBag(sum, per_sample_weights) + reproj Linear folded into one matmul
        out_h = jnp.dot(w_unnorm, vr, preferred_element_type=jnp.float32)  # (TM, D)
        y = y + out_h * pl.reciprocal(denom, approx=True)

    o_ref[...] = y


# --------------------------------- parameter handling -------------------------------------
def init_params(key):
    """Raw parameters mirroring the PyTorch module (Linear weights stored as (in, out))."""
    ks = jax.random.split(key, 6)
    half = K_DIM // 2
    return {
        # query projection Linear(input_dim, heads * k_dim)
        "Wq": jax.random.normal(ks[0], (INPUT_DIM, HEADS * K_DIM), jnp.float32)
              / jnp.sqrt(INPUT_DIM),
        "bq": jnp.zeros((HEADS * K_DIM,), jnp.float32),
        # product sub-keys: (heads, 2, n_keys, k_dim/2)
        "subkeys": jax.random.normal(ks[1], (HEADS, 2, N_KEYS, half), jnp.float32)
                   / jnp.sqrt(half),
        # value table (EmbeddingBag weight): (mem_size, compressed_dim)
        "values": jax.random.normal(ks[2], (MEM_SIZE, COMPRESSED_DIM), jnp.float32)
                  / jnp.sqrt(COMPRESSED_DIM),
        # reproj Linear(compressed_dim, input_dim)
        "Wr": jax.random.normal(ks[3], (COMPRESSED_DIM, INPUT_DIM), jnp.float32)
              / jnp.sqrt(COMPRESSED_DIM),
        "br": jax.random.normal(ks[4], (INPUT_DIM,), jnp.float32) * 0.01,
    }


def _fold_params(p):
    """Algebraic folds (exact linear algebra, f32, negligible under jit):
       * Wq/bq x subkeys -> cartesian score weight W_cart (D, HEADS*MEM), b_cart.
       * values @ Wr     -> single readout+reproj weight vr (MEM, D)."""
    half = K_DIM // 2
    Wq, bq, subkeys = p["Wq"], p["bq"], p["subkeys"]
    wc_heads, bc_heads = [], []
    for h in range(HEADS):
        W1 = Wq[:, h * K_DIM: h * K_DIM + half]            # (D, half)
        W2 = Wq[:, h * K_DIM + half: (h + 1) * K_DIM]      # (D, half)
        b1 = bq[h * K_DIM: h * K_DIM + half]
        b2 = bq[h * K_DIM + half: (h + 1) * K_DIM]
        S1w = W1 @ subkeys[h, 0].T                         # (D, N_KEYS)
        S2w = W2 @ subkeys[h, 1].T                         # (D, N_KEYS)
        S1b = b1 @ subkeys[h, 0].T                         # (N_KEYS,)
        S2b = b2 @ subkeys[h, 1].T
        # slot index = i * N_KEYS + j  (i = half-0 key, j = half-1 key) -> matches values[]
        wc_h = jnp.repeat(S1w, N_KEYS, axis=1) + jnp.tile(S2w, (1, N_KEYS))   # (D, MEM)
        bc_h = jnp.repeat(S1b, N_KEYS) + jnp.tile(S2b, N_KEYS)                # (MEM,)
        wc_heads.append(wc_h)
        bc_heads.append(bc_h)
    wc = jnp.concatenate(wc_heads, axis=1).astype(jnp.float32)        # (D, HEADS*MEM)
    bc = jnp.concatenate(bc_heads).reshape(1, HEADS * MEM_SIZE).astype(jnp.float32)
    vr = (p["values"] @ p["Wr"]).astype(jnp.float32)                  # (MEM, D)
    br = p["br"].reshape(1, INPUT_DIM).astype(jnp.float32)
    return wc, bc, vr, br


# ------------------------------------ forward ---------------------------------------------
def _round_up(a, b):
    return ((a + b - 1) // b) * b


def skip_hashing_memory_forward(x, params):
    orig_ndim = x.ndim
    orig_shape = x.shape
    x_flat = x.reshape(-1, INPUT_DIM) if orig_ndim == 3 else x
    n = x_flat.shape[0]

    wc, bc, vr, br = _fold_params(params)

    # Row tiling: tm = ceil(n / n_tiles) rounded up to 8 (avoids padding blow-up), with
    # n_tiles >= 2 whenever possible so both v7x TensorCores get work. TM capped at 1024:
    # resident working set (score slab + selection temporaries) stays ~8 MiB.
    TM_CAP = 1024
    n_tiles = max(1, -(-n // TM_CAP))
    if n_tiles == 1 and n > 8:
        n_tiles = 2
    tm = _round_up(-(-n // n_tiles), 8)
    n_pad = _round_up(n, tm)
    if n_pad != n:
        x_flat = jnp.pad(x_flat, ((0, n_pad - n), (0, 0)))

    grid = (n_pad // tm,)
    out = pl.pallas_call(
        _fused_shm_kernel,
        grid=grid,
        in_specs=[
            pl.BlockSpec((tm, INPUT_DIM), lambda i: (i, 0)),                 # x
            pl.BlockSpec((INPUT_DIM, HEADS * MEM_SIZE), lambda i: (0, 0)),   # W_cart
            pl.BlockSpec((1, HEADS * MEM_SIZE), lambda i: (0, 0)),           # b_cart
            pl.BlockSpec((MEM_SIZE, INPUT_DIM), lambda i: (0, 0)),           # values@Wr
            pl.BlockSpec((1, INPUT_DIM), lambda i: (0, 0)),                  # br
        ],
        out_specs=pl.BlockSpec((tm, INPUT_DIM), lambda i: (i, 0)),
        out_shape=jax.ShapeDtypeStruct((n_pad, INPUT_DIM), jnp.float32),
        compiler_params=pltpu.CompilerParams(
            dimension_semantics=("parallel",),
            vmem_limit_bytes=32 * 1024 * 1024,
        ),
    )(x_flat, wc, bc, vr, br)

    out = out[:n]
    if orig_ndim == 3:
        out = out.reshape(orig_shape[0], orig_shape[1], INPUT_DIM)
    return out


# -------------------------------------- main ----------------------------------------------
if __name__ == "__main__":
    key = jax.random.PRNGKey(0)
    k_x, k_p = jax.random.split(key)

    B, T = 2, 8
    x = jax.random.normal(k_x, (B, T, INPUT_DIM), jnp.float32)
    params = init_params(k_p)

    fwd = jax.jit(skip_hashing_memory_forward)
    y = jax.block_until_ready(fwd(x, params))

    assert y.shape == (B, T, INPUT_DIM), y.shape
    assert bool(jnp.isfinite(y).all())
    print("KERNEL_OK")
</pallas_src>

<mosaic_0001>
module attributes {stable_mosaic.version = 11 : i64} {
  func.func @_fused_shm_kernel(%arg0: i32, %arg1: memref<8x64xf32, #tpu.memory_space<vmem>>, %arg2: memref<64x512xf32, #tpu.memory_space<vmem>>, %arg3: memref<1x512xf32, #tpu.memory_space<vmem>>, %arg4: memref<256x64xf32, #tpu.memory_space<vmem>>, %arg5: memref<1x64xf32, #tpu.memory_space<vmem>>, %arg6: memref<8x64xf32, #tpu.memory_space<vmem>>) attributes {dimension_semantics = [#tpu.dimension_semantics<parallel>], iteration_bounds = array<i64: 2>, scalar_prefetch = 0 : i64, scratch_operands = 0 : i64, tpu.core_type = #tpu.core_type<tc>, window_params = [{transform_indices = @transform_0, window_bounds = array<i64: 8, 64>}, {pipeline_mode = #tpu.pipeline_mode<synchronous>, transform_indices = @transform_1, window_bounds = array<i64: 64, 512>}, {pipeline_mode = #tpu.pipeline_mode<synchronous>, transform_indices = @transform_2, window_bounds = array<i64: 1, 512>}, {pipeline_mode = #tpu.pipeline_mode<synchronous>, transform_indices = @transform_3, window_bounds = array<i64: 256, 64>}, {pipeline_mode = #tpu.pipeline_mode<synchronous>, transform_indices = @transform_4, window_bounds = array<i64: 1, 64>}, {transform_indices = @transform_5, window_bounds = array<i64: 8, 64>}]} {
    %c0 = arith.constant 0 : index
    %c0_0 = arith.constant 0 : index
    %0 = vector.load %arg1[%c0, %c0_0] : memref<8x64xf32, #tpu.memory_space<vmem>>, vector<8x64xf32>
    %c0_1 = arith.constant 0 : index
    %c0_2 = arith.constant 0 : index
    %1 = vector.load %arg2[%c0_1, %c0_2] : memref<64x512xf32, #tpu.memory_space<vmem>>, vector<64x512xf32>
    %cst = arith.constant dense<0.000000e+00> : vector<8x512xf32>
    %2 = tpu.matmul %0, %1, %cst {dimension_numbers = #tpu.dot_dimension_numbers<[1], [0], [0], [1], [0, 0, 1, 1], [], []>} : vector<8x64xf32>, vector<64x512xf32>, vector<8x512xf32> -> vector<8x512xf32>
    %c0_3 = arith.constant 0 : index
    %c0_4 = arith.constant 0 : index
    %3 = vector.load %arg3[%c0_3, %c0_4] : memref<1x512xf32, #tpu.memory_space<vmem>>, vector<1x512xf32>
    %4 = vector.broadcast %3 : vector<1x512xf32> to vector<8x512xf32>
    %5 = arith.addf %2, %4 : vector<8x512xf32>
    %c0_5 = arith.constant 0 : index
    %c0_6 = arith.constant 0 : index
    %6 = vector.load %arg4[%c0_5, %c0_6] : memref<256x64xf32, #tpu.memory_space<vmem>>, vector<256x64xf32>
    %c0_7 = arith.constant 0 : index
    %c0_8 = arith.constant 0 : index
    %7 = vector.load %arg5[%c0_7, %c0_8] : memref<1x64xf32, #tpu.memory_space<vmem>>, vector<1x64xf32>
    %8 = vector.broadcast %7 : vector<1x64xf32> to vector<8x64xf32>
    %9 = arith.addf %0, %8 : vector<8x64xf32>
    %10 = vector.extract_strided_slice %5 {offsets = [0, 0], sizes = [8, 256], strides = [1, 1]} : vector<8x512xf32> to vector<8x256xf32>
    %cst_9 = arith.constant dense<0xFF800000> : vector<8xf32>
    %11 = vector.multi_reduction <maximumf>, %10, %cst_9 [1] : vector<8x256xf32> to vector<8xf32>
    %12 = vector.shape_cast %11 : vector<8xf32> to vector<8x1xf32>
    %13 = vector.broadcast %12 : vector<8x1xf32> to vector<8x256xf32>
    %14 = arith.cmpf oeq, %10, %13 : vector<8x256xf32>
    %15 = arith.extui %14 : vector<8x256xi1> to vector<8x256xi32>
    %16 = arith.sitofp %15 : vector<8x256xi32> to vector<8x256xf32>
    %cst_10 = arith.constant 1.000000e+00 : f32
    %17 = vector.broadcast %cst_10 : f32 to vector<8x1xf32>
    %cst_11 = arith.constant -1.000000e+30 : f32
    %18 = vector.broadcast %cst_11 : f32 to vector<8x256xf32>
    %19 = arith.select %14, %18, %10 : vector<8x256xi1>, vector<8x256xf32>
    %cst_12 = arith.constant dense<0xFF800000> : vector<8xf32>
    %20 = vector.multi_reduction <maximumf>, %19, %cst_12 [1] : vector<8x256xf32> to vector<8xf32>
    %21 = vector.shape_cast %20 : vector<8xf32> to vector<8x1xf32>
    %22 = arith.subf %21, %12 : vector<8x1xf32>
    %23 = math.exp %22 : vector<8x1xf32>
    %24 = vector.broadcast %21 : vector<8x1xf32> to vector<8x256xf32>
    %25 = arith.cmpf oeq, %19, %24 : vector<8x256xf32>
    %26 = arith.extui %25 : vector<8x256xi1> to vector<8x256xi32>
    %27 = arith.sitofp %26 : vector<8x256xi32> to vector<8x256xf32>
    %28 = vector.broadcast %23 : vector<8x1xf32> to vector<8x256xf32>
    %29 = arith.mulf %27, %28 : vector<8x256xf32>
    %30 = arith.addf %16, %29 : vector<8x256xf32>
    %31 = arith.addf %17, %23 : vector<8x1xf32>
    %cst_13 = arith.constant -1.000000e+30 : f32
    %32 = vector.broadcast %cst_13 : f32 to vector<8x256xf32>
    %33 = arith.select %25, %32, %19 : vector<8x256xi1>, vector<8x256xf32>
    %cst_14 = arith.constant dense<0xFF800000> : vector<8xf32>
    %34 = vector.multi_reduction <maximumf>, %33, %cst_14 [1] : vector<8x256xf32> to vector<8xf32>
    %35 = vector.shape_cast %34 : vector<8xf32> to vector<8x1xf32>
    %36 = arith.subf %35, %12 : vector<8x1xf32>
    %37 = math.exp %36 : vector<8x1xf32>
    %38 = vector.broadcast %35 : vector<8x1xf32> to vector<8x256xf32>
    %39 = arith.cmpf oeq, %33, %38 : vector<8x256xf32>
    %40 = arith.extui %39 : vector<8x256xi1> to vector<8x256xi32>
    %41 = arith.sitofp %40 : vector<8x256xi32> to vector<8x256xf32>
    %42 = vector.broadcast %37 : vector<8x1xf32> to vector<8x256xf32>
    %43 = arith.mulf %41, %42 : vector<8x256xf32>
    %44 = arith.addf %30, %43 : vector<8x256xf32>
    %45 = arith.addf %31, %37 : vector<8x1xf32>
    %cst_15 = arith.constant -1.000000e+30 : f32
    %46 = vector.broadcast %cst_15 : f32 to vector<8x256xf32>
    %47 = arith.select %39, %46, %33 : vector<8x256xi1>, vector<8x256xf32>
    %cst_16 = arith.constant dense<0xFF800000> : vector<8xf32>
    %48 = vector.multi_reduction <maximumf>, %47, %cst_16 [1] : vector<8x256xf32> to vector<8xf32>
    %49 = vector.shape_cast %48 : vector<8xf32> to vector<8x1xf32>
    %50 = arith.subf %49, %12 : vector<8x1xf32>
    %51 = math.exp %50 : vector<8x1xf32>
    %52 = vector.broadcast %49 : vector<8x1xf32> to vector<8x256xf32>
    %53 = arith.cmpf oeq, %47, %52 : vector<8x256xf32>
    %54 = arith.extui %53 : vector<8x256xi1> to vector<8x256xi32>
    %55 = arith.sitofp %54 : vector<8x256xi32> to vector<8x256xf32>
    %56 = vector.broadcast %51 : vector<8x1xf32> to vector<8x256xf32>
    %57 = arith.mulf %55, %56 : vector<8x256xf32>
    %58 = arith.addf %44, %57 : vector<8x256xf32>
    %59 = arith.addf %45, %51 : vector<8x1xf32>
    %cst_17 = arith.constant dense<0.000000e+00> : vector<8x64xf32>
    %60 = tpu.matmul %58, %6, %cst_17 {dimension_numbers = #tpu.dot_dimension_numbers<[1], [0], [0], [1], [0, 0, 1, 1], [], []>} : vector<8x256xf32>, vector<256x64xf32>, vector<8x64xf32> -> vector<8x64xf32>
    %61 = tpu.reciprocal %59 {approx = true} : vector<8x1xf32> -> vector<8x1xf32>
    %62 = vector.broadcast %61 : vector<8x1xf32> to vector<8x64xf32>
    %63 = arith.mulf %60, %62 : vector<8x64xf32>
    %64 = arith.addf %9, %63 : vector<8x64xf32>
    %65 = vector.extract_strided_slice %5 {offsets = [0, 256], sizes = [8, 256], strides = [1, 1]} : vector<8x512xf32> to vector<8x256xf32>
    %cst_18 = arith.constant dense<0xFF800000> : vector<8xf32>
    %66 = vector.multi_reduction <maximumf>, %65, %cst_18 [1] : vector<8x256xf32> to vector<8xf32>
    %67 = vector.shape_cast %66 : vector<8xf32> to vector<8x1xf32>
    %68 = vector.broadcast %67 : vector<8x1xf32> to vector<8x256xf32>
    %69 = arith.cmpf oeq, %65, %68 : vector<8x256xf32>
    %70 = arith.extui %69 : vector<8x256xi1> to vector<8x256xi32>
    %71 = arith.sitofp %70 : vector<8x256xi32> to vector<8x256xf32>
    %cst_19 = arith.constant 1.000000e+00 : f32
    %72 = vector.broadcast %cst_19 : f32 to vector<8x1xf32>
    %cst_20 = arith.constant -1.000000e+30 : f32
    %73 = vector.broadcast %cst_20 : f32 to vector<8x256xf32>
    %74 = arith.select %69, %73, %65 : vector<8x256xi1>, vector<8x256xf32>
    %cst_21 = arith.constant dense<0xFF800000> : vector<8xf32>
    %75 = vector.multi_reduction <maximumf>, %74, %cst_21 [1] : vector<8x256xf32> to vector<8xf32>
    %76 = vector.shape_cast %75 : vector<8xf32> to vector<8x1xf32>
    %77 = arith.subf %76, %67 : vector<8x1xf32>
    %78 = math.exp %77 : vector<8x1xf32>
    %79 = vector.broadcast %76 : vector<8x1xf32> to vector<8x256xf32>
    %80 = arith.cmpf oeq, %74, %79 : vector<8x256xf32>
    %81 = arith.extui %80 : vector<8x256xi1> to vector<8x256xi32>
    %82 = arith.sitofp %81 : vector<8x256xi32> to vector<8x256xf32>
    %83 = vector.broadcast %78 : vector<8x1xf32> to vector<8x256xf32>
    %84 = arith.mulf %82, %83 : vector<8x256xf32>
    %85 = arith.addf %71, %84 : vector<8x256xf32>
    %86 = arith.addf %72, %78 : vector<8x1xf32>
    %cst_22 = arith.constant -1.000000e+30 : f32
    %87 = vector.broadcast %cst_22 : f32 to vector<8x256xf32>
    %88 = arith.select %80, %87, %74 : vector<8x256xi1>, vector<8x256xf32>
    %cst_23 = arith.constant dense<0xFF800000> : vector<8xf32>
    %89 = vector.multi_reduction <maximumf>, %88, %cst_23 [1] : vector<8x256xf32> to vector<8xf32>
    %90 = vector.shape_cast %89 : vector<8xf32> to vector<8x1xf32>
    %91 = arith.subf %90, %67 : vector<8x1xf32>
    %92 = math.exp %91 : vector<8x1xf32>
    %93 = vector.broadcast %90 : vector<8x1xf32> to vector<8x256xf32>
    %94 = arith.cmpf oeq, %88, %93 : vector<8x256xf32>
    %95 = arith.extui %94 : vector<8x256xi1> to vector<8x256xi32>
    %96 = arith.sitofp %95 : vector<8x256xi32> to vector<8x256xf32>
    %97 = vector.broadcast %92 : vector<8x1xf32> to vector<8x256xf32>
    %98 = arith.mulf %96, %97 : vector<8x256xf32>
    %99 = arith.addf %85, %98 : vector<8x256xf32>
    %100 = arith.addf %86, %92 : vector<8x1xf32>
    %cst_24 = arith.constant -1.000000e+30 : f32
    %101 = vector.broadcast %cst_24 : f32 to vector<8x256xf32>
    %102 = arith.select %94, %101, %88 : vector<8x256xi1>, vector<8x256xf32>
    %cst_25 = arith.constant dense<0xFF800000> : vector<8xf32>
    %103 = vector.multi_reduction <maximumf>, %102, %cst_25 [1] : vector<8x256xf32> to vector<8xf32>
    %104 = vector.shape_cast %103 : vector<8xf32> to vector<8x1xf32>
    %105 = arith.subf %104, %67 : vector<8x1xf32>
    %106 = math.exp %105 : vector<8x1xf32>
    %107 = vector.broadcast %104 : vector<8x1xf32> to vector<8x256xf32>
    %108 = arith.cmpf oeq, %102, %107 : vector<8x256xf32>
    %109 = arith.extui %108 : vector<8x256xi1> to vector<8x256xi32>
    %110 = arith.sitofp %109 : vector<8x256xi32> to vector<8x256xf32>
    %111 = vector.broadcast %106 : vector<8x1xf32> to vector<8x256xf32>
    %112 = arith.mulf %110, %111 : vector<8x256xf32>
    %113 = arith.addf %99, %112 : vector<8x256xf32>
    %114 = arith.addf %100, %106 : vector<8x1xf32>
    %cst_26 = arith.constant dense<0.000000e+00> : vector<8x64xf32>
    %115 = tpu.matmul %113, %6, %cst_26 {dimension_numbers = #tpu.dot_dimension_numbers<[1], [0], [0], [1], [0, 0, 1, 1], [], []>} : vector<8x256xf32>, vector<256x64xf32>, vector<8x64xf32> -> vector<8x64xf32>
    %116 = tpu.reciprocal %114 {approx = true} : vector<8x1xf32> -> vector<8x1xf32>
    %117 = vector.broadcast %116 : vector<8x1xf32> to vector<8x64xf32>
    %118 = arith.mulf %115, %117 : vector<8x64xf32>
    %119 = arith.addf %64, %118 : vector<8x64xf32>
    %c0_27 = arith.constant 0 : index
    %c0_28 = arith.constant 0 : index
    %120 = vector.load %arg6[%c0_27, %c0_28] : memref<8x64xf32, #tpu.memory_space<vmem>>, vector<8x64xf32>
    tpu.vector_store %arg6[%c0_27, %c0_28], %119 {strides = array<i32>} : memref<8x64xf32, #tpu.memory_space<vmem>>, vector<8x64xf32>,
    return
  }
  func.func @transform_0(%arg0: i32) -> (i32, i32) {
    %c0_i32 = arith.constant 0 : i32
    %c0_i32_0 = arith.constant 0 : i32
    return %arg0, %c0_i32 : i32, i32
  }
  func.func @transform_1(%arg0: i32) -> (i32, i32) {
    %c0_i32 = arith.constant 0 : i32
    %c0_i32_0 = arith.constant 0 : i32
    %c0_i32_1 = arith.constant 0 : i32
    return %c0_i32, %c0_i32_0 : i32, i32
  }
  func.func @transform_2(%arg0: i32) -> (i32, i32) {
    %c0_i32 = arith.constant 0 : i32
    %c0_i32_0 = arith.constant 0 : i32
    %c0_i32_1 = arith.constant 0 : i32
    return %c0_i32, %c0_i32_0 : i32, i32
  }
  func.func @transform_3(%arg0: i32) -> (i32, i32) {
    %c0_i32 = arith.constant 0 : i32
    %c0_i32_0 = arith.constant 0 : i32
    %c0_i32_1 = arith.constant 0 : i32
    return %c0_i32, %c0_i32_0 : i32, i32
  }
  func.func @transform_4(%arg0: i32) -> (i32, i32) {
    %c0_i32 = arith.constant 0 : i32
    %c0_i32_0 = arith.constant 0 : i32
    %c0_i32_1 = arith.constant 0 : i32
    return %c0_i32, %c0_i32_0 : i32, i32
  }
  func.func @transform_5(%arg0: i32) -> (i32, i32) {
    %c0_i32 = arith.constant 0 : i32
    %c0_i32_0 = arith.constant 0 : i32
    return %arg0, %c0_i32 : i32, i32
  }
}

</mosaic_0001>

<llo_original>
// kernel: skip_hashing_memory_forward.1
$region0: #{skip_hashing_memory_forward.1}
  #allocation0 [shape = 'u32[]', space=smem, size = 0x4, offset = 0x4, fixed_abs, tag = 'smem constant byte address 0x4 - core index']
  #allocation1 [shape = 'u32[144,128]{1,0:T(1,128)}', space=vmem, size = 0x12000, scoped, tag = 'internal scratch']
  %s0 = inlined_call_operand.vmem [shape: f32[16,64], index: 0, kind: input, shape index: {}]
  %s1 = inlined_call_operand.vmem [shape: f32[64,512], index: 1, kind: input, shape index: {}]
  %s2 = inlined_call_operand.vmem [shape: f32[1,512], index: 2, kind: input, shape index: {}]
  %s3 = inlined_call_operand.vmem [shape: f32[256,64], index: 3, kind: input, shape index: {}]
  %s4 = inlined_call_operand.vmem [shape: f32[1,64], index: 4, kind: input, shape index: {}]
  %s5 = inlined_call_operand.hbm [shape: f32[16,64], index: 5, kind: output, shape index: {}]
  %s6 = sld [smem:[#allocation0]]
  $region53: #{skip_hashing_memory_forward.1} parent=0
    _
  %s8 = ssub.s32 1, %s6
  %s9 = scalar_select 0, %s8, %s6
  $region1: #{skip_hashing_memory_forward.1} parent=0
    #allocation2 [shape = 'u8[8192]{0}', space=vmem, size = 0x2000, scoped, tag = 'output window, operand 0']
    #allocation3 [shape = 's32[2]{0}', space=sflag, size = 0x8, scoped, tag = 'scoped memory for skip_hashing_memory_forward.1']
    %10 = vsyncpa [#allocation3], 0
    %s11 = scalar_lea.sflag [#allocation3], 1
    %12 = vsyncpa %s11, 0
    loop: start=0, step=1, limit=4
    $region2: #{skip_hashing_memory_forward.1} parent=1 // loop_pre_header
      _
    $region3: #{skip_hashing_memory_forward.1} parent=1 // loop_header
      %s14 = sphi 0, %s18
      %p15 = scmp.ge.s32.totalorder %s14, 4
      %s24 = sphi 0, %s26
      %s27 = sphi 0, %s24
      %s28 = sphi 0, %s27
      %s44 = sphi 0, %s28
      %s48 = sphi 0, %s48
      %s50 = sphi 0, %s48
      %s51 = sphi 0, %s50
      %s65 = sphi 0, %s51
      %s69 = sphi 0, %s69
      %s71 = sphi 0, %s69
      %s72 = sphi 0, %s71
      %s86 = sphi 0, %s72
      %s90 = sphi 0, %s90
      %s92 = sphi 0, %s90
      %s93 = sphi 0, %s92
      %s107 = sphi 0, %s93
      %s111 = sphi 0, %s111
      %s113 = sphi 0, %s111
      %s114 = sphi 0, %s113
      %s128 = sphi 0, %s114
      %s134 = sphi 0, %s136
      %s137 = sphi 0, %s134
      %s138 = sphi 0, %s137
      %s154 = sphi 0, %s138
    $region4: #{skip_hashing_memory_forward.1} parent=1 // loop_header_branch
      %17 = sbr.rel (%p15) target = $region8
    $region5: #{skip_hashing_memory_forward.1} parent=1 // loop_body
      %s19 = ssub.s32 %s14, 1
      %s20 = ssub.s32 %s14, 2
      %s21 = sadd.s32 %s14, 1
      %s22 = ssub.s32 %s14, %s21
      %p23 = scmp.eq.s32.totalorder %s22, 0
      %s25 = sadd.s32 %s24, 1
      %s26 = scalar_select %p23, %s24, %s25
      %p29 = pneg %p23
      %p30 = scmp.eq.s32.totalorder %s14, 1
      %p31 = por %p29, %p30
      %p32 = scmp.ne.s32.totalorder %s24, %s27
      %p33 = scmp.eq.s32.totalorder %s14, 0
      %p34 = por %p32, %p33
      %p35 = scmp.ne.s32.totalorder %s24, %s27
      %p36 = scmp.eq.s32.totalorder %s19, 1
      %p37 = por %p35, %p36
      %p38 = scmp.ne.s32.totalorder %s27, %s28
      %p39 = scmp.eq.s32.totalorder %s19, 0
      %p40 = por %p38, %p39
      %p41 = scmp.ne.s32.totalorder %s27, %s28
      %p42 = scmp.eq.s32.totalorder %s20, 1
      %p43 = por %p41, %p42
      %p45 = scmp.ne.s32.totalorder %s28, %s44
      %p46 = scmp.eq.s32.totalorder %s20, 0
      %p47 = por %p45, %p46
      %s49 = sadd.s32 %s48, 1
      %p52 = scmp.eq.s32.totalorder %s14, 1
      %p53 = scmp.ne.s32.totalorder %s48, %s50
      %p54 = scmp.eq.s32.totalorder %s14, 0
      %p55 = por %p53, %p54
      %p56 = scmp.ne.s32.totalorder %s48, %s50
      %p57 = scmp.eq.s32.totalorder %s19, 1
      %p58 = por %p56, %p57
      %p59 = scmp.ne.s32.totalorder %s50, %s51
      %p60 = scmp.eq.s32.totalorder %s19, 0
      %p61 = por %p59, %p60
      %p62 = scmp.ne.s32.totalorder %s50, %s51
      %p63 = scmp.eq.s32.totalorder %s20, 1
      %p64 = por %p62, %p63
      %p66 = scmp.ne.s32.totalorder %s51, %s65
      %p67 = scmp.eq.s32.totalorder %s20, 0
      %p68 = por %p66, %p67
      %s70 = sadd.s32 %s69, 1
      %p73 = scmp.eq.s32.totalorder %s14, 1
      %p74 = scmp.ne.s32.totalorder %s69, %s71
      %p75 = scmp.eq.s32.totalorder %s14, 0
      %p76 = por %p74, %p75
      %p77 = scmp.ne.s32.totalorder %s69, %s71
      %p78 = scmp.eq.s32.totalorder %s19, 1
      %p79 = por %p77, %p78
      %p80 = scmp.ne.s32.totalorder %s71, %s72
      %p81 = scmp.eq.s32.totalorder %s19, 0
      %p82 = por %p80, %p81
      %p83 = scmp.ne.s32.totalorder %s71, %s72
      %p84 = scmp.eq.s32.totalorder %s20, 1
      %p85 = por %p83, %p84
      %p87 = scmp.ne.s32.totalorder %s72, %s86
      %p88 = scmp.eq.s32.totalorder %s20, 0
      %p89 = por %p87, %p88
      %s91 = sadd.s32 %s90, 1
      %p94 = scmp.eq.s32.totalorder %s14, 1
      %p95 = scmp.ne.s32.totalorder %s90, %s92
      %p96 = scmp.eq.s32.totalorder %s14, 0
      %p97 = por %p95, %p96
      %p98 = scmp.ne.s32.totalorder %s90, %s92
      %p99 = scmp.eq.s32.totalorder %s19, 1
      %p100 = por %p98, %p99
      %p101 = scmp.ne.s32.totalorder %s92, %s93
      %p102 = scmp.eq.s32.totalorder %s19, 0
      %p103 = por %p101, %p102
      %p104 = scmp.ne.s32.totalorder %s92, %s93
      %p105 = scmp.eq.s32.totalorder %s20, 1
      %p106 = por %p104, %p105
      %p108 = scmp.ne.s32.totalorder %s93, %s107
      %p109 = scmp.eq.s32.totalorder %s20, 0
      %p110 = por %p108, %p109
      %s112 = sadd.s32 %s111, 1
      %p115 = scmp.eq.s32.totalorder %s14, 1
      %p116 = scmp.ne.s32.totalorder %s111, %s113
      %p117 = scmp.eq.s32.totalorder %s14, 0
      %p118 = por %p116, %p117
      %p119 = scmp.ne.s32.totalorder %s111, %s113
      %p120 = scmp.eq.s32.totalorder %s19, 1
      %p121 = por %p119, %p120
      %p122 = scmp.ne.s32.totalorder %s113, %s114
      %p123 = scmp.eq.s32.totalorder %s19, 0
      %p124 = por %p122, %p123
      %p125 = scmp.ne.s32.totalorder %s113, %s114
      %p126 = scmp.eq.s32.totalorder %s20, 1
      %p127 = por %p125, %p126
      %p129 = scmp.ne.s32.totalorder %s114, %s128
      %p130 = scmp.eq.s32.totalorder %s20, 0
      %p131 = por %p129, %p130
      %s132 = ssub.s32 %s14, %s21
      %p133 = scmp.eq.s32.totalorder %s132, 0
      %s135 = sadd.s32 %s134, 1
      %s136 = scalar_select %p133, %s134, %s135
      %p139 = pneg %p133
      %p140 = scmp.eq.s32.totalorder %s14, 1
      %p141 = por %p139, %p140
      %p142 = scmp.ne.s32.totalorder %s134, %s137
      %p143 = scmp.eq.s32.totalorder %s14, 0
      %p144 = por %p142, %p143
      %p145 = scmp.ne.s32.totalorder %s134, %s137
      %p146 = scmp.eq.s32.totalorder %s19, 1
      %p147 = por %p145, %p146
      %p148 = scmp.ne.s32.totalorder %s137, %s138
      %p149 = scmp.eq.s32.totalorder %s19, 0
      %p150 = por %p148, %p149
      %p151 = scmp.ne.s32.totalorder %s137, %s138
      %p152 = scmp.eq.s32.totalorder %s20, 1
      %p153 = por %p151, %p152
      %p155 = scmp.ne.s32.totalorder %s138, %s154
      %p156 = scmp.eq.s32.totalorder %s20, 0
      %p157 = por %p155, %p156
      %p158 = scmp.le.s32.totalorder 1, %s14
      %p159 = scmp.lt.s32.totalorder %s14, 3
      %p160 = pnand %p158, %p159
      %p161 = pneg %p160
      // Predicated region
      $region9: #{skip_hashing_memory_forward.1} parent=5 // pred_check
        _
      $region10: #{skip_hashing_memory_forward.1} parent=5 // pred_check_branch
        %163 = sbr.rel (%p160) target = $region12
      $region11: #{skip_hashing_memory_forward.1} parent=5 // pred_region
        %s164 = ssub.s32 %s14, 1
        // Predicated region
        $region13: #{skip_hashing_memory_forward.1} parent=11 // pred_check
          %p165 = pneg %p61
        $region14: #{skip_hashing_memory_forward.1} parent=11 // pred_check_branch
          %167 = sbr.rel (%p165) target = $region16
        $region15: #{skip_hashing_memory_forward.1} parent=11 // pred_region
          _
        $region16: #{skip_hashing_memory_forward.1} parent=11 // pred_fallthru
          _
        // Predicated region
        $region17: #{skip_hashing_memory_forward.1} parent=11 // pred_check
          %p168 = pneg %p82
        $region18: #{skip_hashing_memory_forward.1} parent=11 // pred_check_branch
          %170 = sbr.rel (%p168) target = $region20
        $region19: #{skip_hashing_memory_forward.1} parent=11 // pred_region
          _
        $region20: #{skip_hashing_memory_forward.1} parent=11 // pred_fallthru
          _
        // Predicated region
        $region21: #{skip_hashing_memory_forward.1} parent=11 // pred_check
          %p171 = pneg %p103
        $region22: #{skip_hashing_memory_forward.1} parent=11 // pred_check_branch
          %173 = sbr.rel (%p171) target = $region24
        $region23: #{skip_hashing_memory_forward.1} parent=11 // pred_region
          _
        $region24: #{skip_hashing_memory_forward.1} parent=11 // pred_fallthru
          _
        // Predicated region
        $region25: #{skip_hashing_memory_forward.1} parent=11 // pred_check
          %p174 = pneg %p124
        $region26: #{skip_hashing_memory_forward.1} parent=11 // pred_check_branch
          %176 = sbr.rel (%p174) target = $region28
        $region27: #{skip_hashing_memory_forward.1} parent=11 // pred_region
          _
        $region28: #{skip_hashing_memory_forward.1} parent=11 // pred_fallthru
          _
      $region12: #{skip_hashing_memory_forward.1} parent=5 // pred_fallthru
        _
      %p177 = scmp.lt.s32.totalorder %s14, 2
      // Predicated region
      $region29: #{skip_hashing_memory_forward.1} parent=5 // pred_check
        %p178 = pneg %p177
      $region30: #{skip_hashing_memory_forward.1} parent=5 // pred_check_branch
        %180 = sbr.rel (%p178) target = $region32
      $region31: #{skip_hashing_memory_forward.1} parent=5 // pred_region
        // Predicated region
        $region33: #{skip_hashing_memory_forward.1} parent=31 // pred_check
          %p181 = pneg %p34
        $region34: #{skip_hashing_memory_forward.1} parent=31 // pred_check_branch
          %183 = sbr.rel (%p181) target = $region36
        $region35: #{skip_hashing_memory_forward.1} parent=31 // pred_region
          %p184 = scmp.lt.s32.totalorder %s14, 1
          %s185 = scalar_select %p184, %s14, 1
          %s186 = smul.addr %s185, 8
          %s187 = scalar_lea.vmem %s0, %s186
        $region36: #{skip_hashing_memory_forward.1} parent=31 // pred_fallthru
          _
      $region32: #{skip_hashing_memory_forward.1} parent=5 // pred_fallthru
        _
      %p188 = scmp.le.s32.totalorder 1, %s14
      %p189 = scmp.lt.s32.totalorder %s14, 3
      %p190 = pnand %p188, %p189
      %p191 = pneg %p190
      // Predicated region
      $region37: #{skip_hashing_memory_forward.1} parent=5 // pred_check
        _
      $region38: #{skip_hashing_memory_forward.1} parent=5 // pred_check_branch
        %193 = sbr.rel (%p190) target = $region40
      $region39: #{skip_hashing_memory_forward.1} parent=5 // pred_region
        %s194 = ssub.s32 %s14, 1
        %p195 = scmp.lt.s32.totalorder %s19, 1
        %s196 = scalar_select %p195, %s19, 1
        %s197 = smul.addr %s196, 8
        %s198 = scalar_lea.vmem %s0, %s197
        %p199 = pneg %p40
        %p200 = pneg %p37
        %p201 = pneg %p61
        %p202 = pneg %p58
        %p203 = pneg %p82
        %p204 = pneg %p79
        %p205 = pneg %p103
        %p206 = pneg %p100
        %p207 = pneg %p124
        %p208 = pneg %p121
        %p209 = pneg %p150
        %p210 = pneg %p147
        %s211 = sand.u32 %s137, 1
        %s212 = scalar_lea.sflag [#allocation3], %s211
        %s213 = sand.u32 %s137, 1
        %s214 = smul.addr %s213, 8
        %s215 = scalar_lea.vmem [#allocation2], %s214
        %p216 = scmp.lt.s32.totalorder %s19, 1
        %s217 = scalar_select %p216, %s19, 1
        %s218 = smul.addr %s217, 8
        %s219 = scalar_lea.vmem %s0, %s218
        %v220 = vld [vmem:[%s219] sm:$0xff]
        %v221 = vld [vmem:[%s1] sm:$0xff]
        %v222 = vld [vmem:[%s1 + $0x8] sm:$0xff]
        %v223 = vld [vmem:[%s1 + $0x10] sm:$0xff]
        %v224 = vld [vmem:[%s1 + $0x18] sm:$0xff]
        %v225 = vld [vmem:[%s1 + $0x20] sm:$0xff]
        %v226 = vld [vmem:[%s1 + $0x28] sm:$0xff]
        %v227 = vld [vmem:[%s1 + $0x30] sm:$0xff]
        %v228 = vld [vmem:[%s1 + $0x38] sm:$0xff]
        %v229 = vld [vmem:[%s1 + $0x40] sm:$0xff]
        %v230 = vld [vmem:[%s1 + $0x48] sm:$0xff]
        %v231 = vld [vmem:[%s1 + $0x50] sm:$0xff]
        %v232 = vld [vmem:[%s1 + $0x58] sm:$0xff]
        %v233 = vld [vmem:[%s1 + $0x60] sm:$0xff]
        %v234 = vld [vmem:[%s1 + $0x68] sm:$0xff]
        %v235 = vld [vmem:[%s1 + $0x70] sm:$0xff]
        %v236 = vld [vmem:[%s1 + $0x78] sm:$0xff]
        %v237 = vld [vmem:[%s1 + $0x80] sm:$0xff]
        %v238 = vld [vmem:[%s1 + $0x88] sm:$0xff]
        %v239 = vld [vmem:[%s1 + $0x90] sm:$0xff]
        %v240 = vld [vmem:[%s1 + $0x98] sm:$0xff]
        %v241 = vld [vmem:[%s1 + $0xa0] sm:$0xff]
        %v242 = vld [vmem:[%s1 + $0xa8] sm:$0xff]
        %v243 = vld [vmem:[%s1 + $0xb0] sm:$0xff]
        %v244 = vld [vmem:[%s1 + $0xb8] sm:$0xff]
        %v245 = vld [vmem:[%s1 + $0xc0] sm:$0xff]
        %v246 = vld [vmem:[%s1 + $0xc8] sm:$0xff]
        %v247 = vld [vmem:[%s1 + $0xd0] sm:$0xff]
        %v248 = vld [vmem:[%s1 + $0xd8] sm:$0xff]
        %v249 = vld [vmem:[%s1 + $0xe0] sm:$0xff]
        %v250 = vld [vmem:[%s1 + $0xe8] sm:$0xff]
        %v251 = vld [vmem:[%s1 + $0xf0] sm:$0xff]
        %v252 = vld [vmem:[%s1 + $0xf8] sm:$0xff]
        %v253 = vld [vmem:[%s2] sm:$0xf]
        %v255 = vlaneseq
        %v256 = vshrl.u32 %v255, 7
        %v257 = vsub.s32 0, %v256
        %v258 = vrot.slane %v253, %v257
        %v259 = vlaneseq
        %v260 = vshrl.u32 %v259, 7
        %v261 = vsub.s32 1, %v260
        %v262 = vrot.slane %v253, %v261
        %v263 = vlaneseq
        %v264 = vshrl.u32 %v263, 7
        %v265 = vsub.s32 2, %v264
        %v266 = vrot.slane %v253, %v265
        %v267 = vlaneseq
        %v268 = vshrl.u32 %v267, 7
        %v269 = vsub.s32 3, %v268
        %v270 = vrot.slane %v253, %v269
        %vm275 = vcmask 523264
        %v277 = vsel %vm275, %v220, 0
        %279 = vmatprep.subr.mxu0 0.0
        %280 = vmatpush1.msra.mxu0 0.0
        %281 = vmatprep.subr.mxu0 0.0
        %282 = vmatpush1.msra.mxu0 0.0
        %283 = vmatprep.subr.mxu0 0.0
        %284 = vmatpush1.msra.mxu0 0.0
        %285 = vmatprep.subr.mxu0 0.0
        %286 = vmatpush1.msra.mxu0 0.0
        %287 = vmatprep.subr.mxu0 0.0
        %288 = vmatpush1.msra.mxu0 0.0
        %289 = vmatprep.subr.mxu0 0.0
        %290 = vmatpush1.msra.mxu0 0.0
        %291 = vmatprep.subr.mxu0 0.0
        %292 = vmatpush1.msra.mxu0 0.0
        %293 = vmatprep.subr.mxu0 0.0
        %294 = vmatpush1.msra.mxu0 0.0
        %295 = vmatprep.subr.mxu0 %v250
        %296 = vmatpush1.msra.mxu0 %v249
        %297 = vmatprep.subr.mxu0 %v246
        %298 = vmatpush1.msra.mxu0 %v245
        %299 = vmatprep.subr.mxu0 %v242
        %300 = vmatpush1.msra.mxu0 %v241
        %301 = vmatprep.subr.mxu0 %v238
        %302 = vmatpush1.msra.mxu0 %v237
        %303 = vmatprep.subr.mxu0 %v234
        %304 = vmatpush1.msra.mxu0 %v233
        %305 = vmatprep.subr.mxu0 %v230
        %306 = vmatpush1.msra.mxu0 %v229
        %307 = vmatprep.subr.mxu0 %v226
        %308 = vmatpush1.msra.mxu0 %v225
        %309 = vmatprep.subr.mxu0 %v222
        %310 = vmatpush1.msra.mxu0 %v221
        %311 = vmatprep.subr.mxu0 0.0
        %312 = vmatpush2.msra.mxu0 0.0
        %313 = vmatprep.subr.mxu0 0.0
        %314 = vmatpush2.msra.mxu0 0.0
        %315 = vmatprep.subr.mxu0 0.0
        %316 = vmatpush2.msra.mxu0 0.0
        %317 = vmatprep.subr.mxu0 0.0
        %318 = vmatpush2.msra.mxu0 0.0
        %319 = vmatprep.subr.mxu0 0.0
        %320 = vmatpush2.msra.mxu0 0.0
        %321 = vmatprep.subr.mxu0 0.0
        %322 = vmatpush2.msra.mxu0 0.0
        %323 = vmatprep.subr.mxu0 0.0
        %324 = vmatpush2.msra.mxu0 0.0
        %325 = vmatprep.subr.mxu0 0.0
        %326 = vmatpush2.msra.mxu0 0.0
        %327 = vmatprep.subr.mxu0 0.0
        %328 = vmatpush2.msra.mxu0 0.0
        %329 = vmatprep.subr.mxu0 0.0
        %330 = vmatpush2.msra.mxu0 0.0
        %331 = vmatprep.subr.mxu0 0.0
        %332 = vmatpush2.msra.mxu0 0.0
        %333 = vmatprep.subr.mxu0 0.0
        %334 = vmatpush2.msra.mxu0 0.0
        %335 = vmatprep.subr.mxu0 0.0
        %336 = vmatpush2.msra.mxu0 0.0
        %337 = vmatprep.subr.mxu0 0.0
        %338 = vmatpush2.msra.mxu0 0.0
        %339 = vmatprep.subr.mxu0 0.0
        %340 = vmatpush2.msra.mxu0 0.0
        %341 = vmatprep.subr.mxu0 0.0
        %342 = vmatpush2.msra.mxu0 0.0
        %343 = vmatprep.mubr.f32.mxu0 0.0
        %344 = vmatmul.mubr.f32.gmra.mxu0 %v277
        %v345 = vpop.f32.mrf.mxu0
        %v346 = vadd.f32 %v258, %v345
        %v347 = vpop.f32.mrf.mxu0
        %v348 = vadd.f32 %v262, %v347
        %349 = vdwg.mxu0
        %350 = vmatprep.subr.mxu0 0.0
        %351 = vmatpush1.msra.mxu0 0.0
        %352 = vmatprep.subr.mxu0 0.0
        %353 = vmatpush1.msra.mxu0 0.0
        %354 = vmatprep.subr.mxu0 0.0
        %355 = vmatpush1.msra.mxu0 0.0
        %356 = vmatprep.subr.mxu0 0.0
        %357 = vmatpush1.msra.mxu0 0.0
        %358 = vmatprep.subr.mxu0 0.0
        %359 = vmatpush1.msra.mxu0 0.0
        %360 = vmatprep.subr.mxu0 0.0
        %361 = vmatpush1.msra.mxu0 0.0
        %362 = vmatprep.subr.mxu0 0.0
        %363 = vmatpush1.msra.mxu0 0.0
        %364 = vmatprep.subr.mxu0 0.0
        %365 = vmatpush1.msra.mxu0 0.0
        %366 = vmatprep.subr.mxu0 %v252
        %367 = vmatpush1.msra.mxu0 %v251
        %368 = vmatprep.subr.mxu0 %v248
        %369 = vmatpush1.msra.mxu0 %v247
        %370 = vmatprep.subr.mxu0 %v244
        %371 = vmatpush1.msra.mxu0 %v243
        %372 = vmatprep.subr.mxu0 %v240
        %373 = vmatpush1.msra.mxu0 %v239
        %374 = vmatprep.subr.mxu0 %v236
        %375 = vmatpush1.msra.mxu0 %v235
        %376 = vmatprep.subr.mxu0 %v232
        %377 = vmatpush1.msra.mxu0 %v231
        %378 = vmatprep.subr.mxu0 %v228
        %379 = vmatpush1.msra.mxu0 %v227
        %380 = vmatprep.subr.mxu0 %v224
        %381 = vmatpush1.msra.mxu0 %v223
        %382 = vmatprep.subr.mxu0 0.0
        %383 = vmatpush2.msra.mxu0 0.0
        %384 = vmatprep.subr.mxu0 0.0
        %385 = vmatpush2.msra.mxu0 0.0
        %386 = vmatprep.subr.mxu0 0.0
        %387 = vmatpush2.msra.mxu0 0.0
        %388 = vmatprep.subr.mxu0 0.0
        %389 = vmatpush2.msra.mxu0 0.0
        %390 = vmatprep.subr.mxu0 0.0
        %391 = vmatpush2.msra.mxu0 0.0
        %392 = vmatprep.subr.mxu0 0.0
        %393 = vmatpush2.msra.mxu0 0.0
        %394 = vmatprep.subr.mxu0 0.0
        %395 = vmatpush2.msra.mxu0 0.0
        %396 = vmatprep.subr.mxu0 0.0
        %397 = vmatpush2.msra.mxu0 0.0
        %398 = vmatprep.subr.mxu0 0.0
        %399 = vmatpush2.msra.mxu0 0.0
        %400 = vmatprep.subr.mxu0 0.0
        %401 = vmatpush2.msra.mxu0 0.0
        %402 = vmatprep.subr.mxu0 0.0
        %403 = vmatpush2.msra.mxu0 0.0
        %404 = vmatprep.subr.mxu0 0.0
        %405 = vmatpush2.msra.mxu0 0.0
        %406 = vmatprep.subr.mxu0 0.0
        %407 = vmatpush2.msra.mxu0 0.0
        %408 = vmatprep.subr.mxu0 0.0
        %409 = vmatpush2.msra.mxu0 0.0
        %410 = vmatprep.subr.mxu0 0.0
        %411 = vmatpush2.msra.mxu0 0.0
        %412 = vmatprep.subr.mxu0 0.0
        %413 = vmatpush2.msra.mxu0 0.0
        %414 = vmatprep.mubr.f32.mxu0 0.0
        %415 = vmatmul.mubr.f32.gmra.mxu0 %v277
        %v416 = vpop.f32.mrf.mxu0
        %v417 = vadd.f32 %v266, %v416
        %v418 = vpop.f32.mrf.mxu0
        %v419 = vadd.f32 %v270, %v418
        %420 = vdwg.mxu0
        %v421 = vld [vmem:[%s3] sm:$0xff]
        %v422 = vld [vmem:[%s3 + $0x8] sm:$0xff]
        %v423 = vld [vmem:[%s3 + $0x10] sm:$0xff]
        %v424 = vld [vmem:[%s3 + $0x18] sm:$0xff]
        %v425 = vld [vmem:[%s3 + $0x20] sm:$0xff]
        %v426 = vld [vmem:[%s3 + $0x28] sm:$0xff]
        %v427 = vld [vmem:[%s3 + $0x30] sm:$0xff]
        %v428 = vld [vmem:[%s3 + $0x38] sm:$0xff]
        %v429 = vld [vmem:[%s3 + $0x40] sm:$0xff]
        %v430 = vld [vmem:[%s3 + $0x48] sm:$0xff]
        %v431 = vld [vmem:[%s3 + $0x50] sm:$0xff]
        %v432 = vld [vmem:[%s3 + $0x58] sm:$0xff]
        %v433 = vld [vmem:[%s3 + $0x60] sm:$0xff]
        %v434 = vld [vmem:[%s3 + $0x68] sm:$0xff]
        %v435 = vld [vmem:[%s3 + $0x70] sm:$0xff]
        %v436 = vld [vmem:[%s3 + $0x78] sm:$0xff]
        %v437 = vld [vmem:[%s3 + $0x80] sm:$0xff]
        %v438 = vld [vmem:[%s3 + $0x88] sm:$0xff]
        %v439 = vld [vmem:[%s3 + $0x90] sm:$0xff]
        %v440 = vld [vmem:[%s3 + $0x98] sm:$0xff]
        %v441 = vld [vmem:[%s3 + $0xa0] sm:$0xff]
        %v442 = vld [vmem:[%s3 + $0xa8] sm:$0xff]
        %v443 = vld [vmem:[%s3 + $0xb0] sm:$0xff]
        %v444 = vld [vmem:[%s3 + $0xb8] sm:$0xff]
        %v445 = vld [vmem:[%s3 + $0xc0] sm:$0xff]
        %v446 = vld [vmem:[%s3 + $0xc8] sm:$0xff]
        %v447 = vld [vmem:[%s3 + $0xd0] sm:$0xff]
        %v448 = vld [vmem:[%s3 + $0xd8] sm:$0xff]
        %v449 = vld [vmem:[%s3 + $0xe0] sm:$0xff]
        %v450 = vld [vmem:[%s3 + $0xe8] sm:$0xff]
        %v451 = vld [vmem:[%s3 + $0xf0] sm:$0xff]
        %v452 = vld [vmem:[%s3 + $0xf8] sm:$0xff]
        %v453 = vld [vmem:[%s4] sm:$0x1]
        %v455 = vlaneseq
        %v456 = vshrl.u32 %v455, 7
        %v457 = vsub.s32 0, %v456
        %v458 = vrot.slane %v453, %v457
        %v460 = vadd.f32 %v220, %v458
        %v461 = vmax.f32 %v346, %v348
        %462 = vmax.xlane.f32.xlu0 %v461
        %v463 = vpop.xlane.xlu0 %462
        %vm464 = vcmp.eq.f32.partialorder %v346, %v463
        %vm465 = vcmp.eq.f32.partialorder %v348, %v463
        %v466 = vsel %vm464, 1, 0
        %v467 = vsel %vm465, 1, 0
        %v468 = vcvt.s32.f32 %v466
        %v469 = vcvt.s32.f32 %v467
        %v470 = vsel %vm464, -1e+30, %v346
        %v471 = vsel %vm465, -1e+30, %v348
        %v472 = vmax.f32 %v470, %v471
        %473 = vmax.xlane.f32.xlu0 %v472
        %v474 = vpop.xlane.xlu0 %473
        %v475 = vsub.f32 %v474, %v463
        %v476 = vmul.f32 %v475, 1.442695
        %v477 = vpow.pop %v476
        %vm478 = vcmp.eq.f32.partialorder %v470, %v474
        %vm479 = vcmp.eq.f32.partialorder %v471, %v474
        %v480 = vsel %vm478, 1, 0
        %v481 = vsel %vm479, 1, 0
        %v482 = vcvt.s32.f32 %v480
        %v483 = vcvt.s32.f32 %v481
        %v484 = vmul.f32 %v482, %v477
        %v485 = vmul.f32 %v483, %v477
        %v486 = vadd.f32 %v468, %v484
        %v487 = vadd.f32 %v469, %v485
        %v488 = vadd.f32 %v477, 1.0
        %v489 = vsel %vm478, -1e+30, %v470
        %v490 = vsel %vm479, -1e+30, %v471
        %v491 = vmax.f32 %v489, %v490
        %492 = vmax.xlane.f32.xlu0 %v491
        %v493 = vpop.xlane.xlu0 %492
        %v494 = vsub.f32 %v493, %v463
        %v495 = vmul.f32 %v494, 1.442695
        %v496 = vpow.pop %v495
        %vm497 = vcmp.eq.f32.partialorder %v489, %v493
        %vm498 = vcmp.eq.f32.partialorder %v490, %v493
        %v499 = vsel %vm497, 1, 0
        %v500 = vsel %vm498, 1, 0
        %v501 = vcvt.s32.f32 %v499
        %v502 = vcvt.s32.f32 %v500
        %v503 = vmul.f32 %v501, %v496
        %v504 = vmul.f32 %v502, %v496
        %v505 = vadd.f32 %v486, %v503
        %v506 = vadd.f32 %v487, %v504
        %v507 = vadd.f32 %v488, %v496
        %v508 = vsel %vm497, -1e+30, %v489
        %v509 = vsel %vm498, -1e+30, %v490
        %v510 = vmax.f32 %v508, %v509
        %511 = vmax.xlane.f32.xlu0 %v510
        %v512 = vpop.xlane.xlu0 %511
        %v513 = vsub.f32 %v512, %v463
        %v514 = vmul.f32 %v513, 1.442695
        %v515 = vpow.pop %v514
        %vm516 = vcmp.eq.f32.partialorder %v508, %v512
        %vm517 = vcmp.eq.f32.partialorder %v509, %v512
        %v518 = vsel %vm516, 1, 0
        %v519 = vsel %vm517, 1, 0
        %v520 = vcvt.s32.f32 %v518
        %v521 = vcvt.s32.f32 %v519
        %v522 = vmul.f32 %v520, %v515
        %v523 = vmul.f32 %v521, %v515
        %v524 = vadd.f32 %v505, %v522
        %v525 = vadd.f32 %v506, %v523
        %v526 = vadd.f32 %v507, %v515
        %527 = vmatprep.subr.mxu0 0.0
        %528 = vmatpush1.msra.mxu0 %v436
        %529 = vmatprep.subr.mxu0 0.0
        %530 = vmatpush1.msra.mxu0 %v435
        %531 = vmatprep.subr.mxu0 0.0
        %532 = vmatpush1.msra.mxu0 %v434
        %533 = vmatprep.subr.mxu0 0.0
        %534 = vmatpush1.msra.mxu0 %v433
        %535 = vmatprep.subr.mxu0 0.0
        %536 = vmatpush1.msra.mxu0 %v432
        %537 = vmatprep.subr.mxu0 0.0
        %538 = vmatpush1.msra.mxu0 %v431
        %539 = vmatprep.subr.mxu0 0.0
        %540 = vmatpush1.msra.mxu0 %v430
        %541 = vmatprep.subr.mxu0 0.0
        %542 = vmatpush1.msra.mxu0 %v429
        %543 = vmatprep.subr.mxu0 0.0
        %544 = vmatpush1.msra.mxu0 %v428
        %545 = vmatprep.subr.mxu0 0.0
        %546 = vmatpush1.msra.mxu0 %v427
        %547 = vmatprep.subr.mxu0 0.0
        %548 = vmatpush1.msra.mxu0 %v426
        %549 = vmatprep.subr.mxu0 0.0
        %550 = vmatpush1.msra.mxu0 %v425
        %551 = vmatprep.subr.mxu0 0.0
        %552 = vmatpush1.msra.mxu0 %v424
        %553 = vmatprep.subr.mxu0 0.0
        %554 = vmatpush1.msra.mxu0 %v423
        %555 = vmatprep.subr.mxu0 0.0
        %556 = vmatpush1.msra.mxu0 %v422
        %557 = vmatprep.subr.mxu0 0.0
        %558 = vmatpush1.msra.mxu0 %v421
        %559 = vmatprep.subr.mxu0 0.0
        %560 = vmatpush2.msra.mxu0 %v452
        %561 = vmatprep.subr.mxu0 0.0
        %562 = vmatpush2.msra.mxu0 %v451
        %563 = vmatprep.subr.mxu0 0.0
        %564 = vmatpush2.msra.mxu0 %v450
        %565 = vmatprep.subr.mxu0 0.0
        %566 = vmatpush2.msra.mxu0 %v449
        %567 = vmatprep.subr.mxu0 0.0
        %568 = vmatpush2.msra.mxu0 %v448
        %569 = vmatprep.subr.mxu0 0.0
        %570 = vmatpush2.msra.mxu0 %v447
        %571 = vmatprep.subr.mxu0 0.0
        %572 = vmatpush2.msra.mxu0 %v446
        %573 = vmatprep.subr.mxu0 0.0
        %574 = vmatpush2.msra.mxu0 %v445
        %575 = vmatprep.subr.mxu0 0.0
        %576 = vmatpush2.msra.mxu0 %v444
        %577 = vmatprep.subr.mxu0 0.0
        %578 = vmatpush2.msra.mxu0 %v443
        %579 = vmatprep.subr.mxu0 0.0
        %580 = vmatpush2.msra.mxu0 %v442
        %581 = vmatprep.subr.mxu0 0.0
        %582 = vmatpush2.msra.mxu0 %v441
        %583 = vmatprep.subr.mxu0 0.0
        %584 = vmatpush2.msra.mxu0 %v440
        %585 = vmatprep.subr.mxu0 0.0
        %586 = vmatpush2.msra.mxu0 %v439
        %587 = vmatprep.subr.mxu0 0.0
        %588 = vmatpush2.msra.mxu0 %v438
        %589 = vmatprep.subr.mxu0 0.0
        %590 = vmatpush2.msra.mxu0 %v437
        %591 = vmatprep.mubr.f32.mxu0 %v525
        %592 = vmatmul.mubr.f32.gmra.mxu0 %v524
        %v593 = vpop.f32.mrf.mxu0
        %v594 = vadd.f32 0.0, %v593
        %v595 = vpop.f32.mrf.mxu0
        %596 = vdwg.mxu0
        %v597 = vrcp.pop %v526
        %v598 = vmul.f32 %v594, %v597
        %v599 = vadd.f32 %v460, %v598
        %v600 = vmax.f32 %v417, %v419
        %601 = vmax.xlane.f32.xlu0 %v600
        %v602 = vpop.xlane.xlu0 %601
        %vm603 = vcmp.eq.f32.partialorder %v417, %v602
        %vm604 = vcmp.eq.f32.partialorder %v419, %v602
        %v605 = vsel %vm603, 1, 0
        %v606 = vsel %vm604, 1, 0
        %v607 = vcvt.s32.f32 %v605
        %v608 = vcvt.s32.f32 %v606
        %v609 = vsel %vm603, -1e+30, %v417
        %v610 = vsel %vm604, -1e+30, %v419
        %v611 = vmax.f32 %v609, %v610
        %612 = vmax.xlane.f32.xlu0 %v611
        %v613 = vpop.xlane.xlu0 %612
        %v614 = vsub.f32 %v613, %v602
        %v615 = vmul.f32 %v614, 1.442695
        %v616 = vpow.pop %v615
        %vm617 = vcmp.eq.f32.partialorder %v609, %v613
        %vm618 = vcmp.eq.f32.partialorder %v610, %v613
        %v619 = vsel %vm617, 1, 0
        %v620 = vsel %vm618, 1, 0
        %v621 = vcvt.s32.f32 %v619
        %v622 = vcvt.s32.f32 %v620
        %v623 = vmul.f32 %v621, %v616
        %v624 = vmul.f32 %v622, %v616
        %v625 = vadd.f32 %v607, %v623
        %v626 = vadd.f32 %v608, %v624
        %v627 = vadd.f32 %v616, 1.0
        %v628 = vsel %vm617, -1e+30, %v609
        %v629 = vsel %vm618, -1e+30, %v610
        %v630 = vmax.f32 %v628, %v629
        %631 = vmax.xlane.f32.xlu0 %v630
        %v632 = vpop.xlane.xlu0 %631
        %v633 = vsub.f32 %v632, %v602
        %v634 = vmul.f32 %v633, 1.442695
        %v635 = vpow.pop %v634
        %vm636 = vcmp.eq.f32.partialorder %v628, %v632
        %vm637 = vcmp.eq.f32.partialorder %v629, %v632
        %v638 = vsel %vm636, 1, 0
        %v639 = vsel %vm637, 1, 0
        %v640 = vcvt.s32.f32 %v638
        %v641 = vcvt.s32.f32 %v639
        %v642 = vmul.f32 %v640, %v635
        %v643 = vmul.f32 %v641, %v635
        %v644 = vadd.f32 %v625, %v642
        %v645 = vadd.f32 %v626, %v643
        %v646 = vadd.f32 %v627, %v635
        %v647 = vsel %vm636, -1e+30, %v628
        %v648 = vsel %vm637, -1e+30, %v629
        %v649 = vmax.f32 %v647, %v648
        %650 = vmax.xlane.f32.xlu0 %v649
        %v651 = vpop.xlane.xlu0 %650
        %v652 = vsub.f32 %v651, %v602
        %v653 = vmul.f32 %v652, 1.442695
        %v654 = vpow.pop %v653
        %vm655 = vcmp.eq.f32.partialorder %v647, %v651
        %vm656 = vcmp.eq.f32.partialorder %v648, %v651
        %v657 = vsel %vm655, 1, 0
        %v658 = vsel %vm656, 1, 0
        %v659 = vcvt.s32.f32 %v657
        %v660 = vcvt.s32.f32 %v658
        %v661 = vmul.f32 %v659, %v654
        %v662 = vmul.f32 %v660, %v654
        %v663 = vadd.f32 %v644, %v661
        %v664 = vadd.f32 %v645, %v662
        %v665 = vadd.f32 %v646, %v654
        %666 = vmatprep.subr.mxu0 0.0
        %667 = vmatpush1.msra.mxu0 %v436
        %668 = vmatprep.subr.mxu0 0.0
        %669 = vmatpush1.msra.mxu0 %v435
        %670 = vmatprep.subr.mxu0 0.0
        %671 = vmatpush1.msra.mxu0 %v434
        %672 = vmatprep.subr.mxu0 0.0
        %673 = vmatpush1.msra.mxu0 %v433
        %674 = vmatprep.subr.mxu0 0.0
        %675 = vmatpush1.msra.mxu0 %v432
        %676 = vmatprep.subr.mxu0 0.0
        %677 = vmatpush1.msra.mxu0 %v431
        %678 = vmatprep.subr.mxu0 0.0
        %679 = vmatpush1.msra.mxu0 %v430
        %680 = vmatprep.subr.mxu0 0.0
        %681 = vmatpush1.msra.mxu0 %v429
        %682 = vmatprep.subr.mxu0 0.0
        %683 = vmatpush1.msra.mxu0 %v428
        %684 = vmatprep.subr.mxu0 0.0
        %685 = vmatpush1.msra.mxu0 %v427
        %686 = vmatprep.subr.mxu0 0.0
        %687 = vmatpush1.msra.mxu0 %v426
        %688 = vmatprep.subr.mxu0 0.0
        %689 = vmatpush1.msra.mxu0 %v425
        %690 = vmatprep.subr.mxu0 0.0
        %691 = vmatpush1.msra.mxu0 %v424
        %692 = vmatprep.subr.mxu0 0.0
        %693 = vmatpush1.msra.mxu0 %v423
        %694 = vmatprep.subr.mxu0 0.0
        %695 = vmatpush1.msra.mxu0 %v422
        %696 = vmatprep.subr.mxu0 0.0
        %697 = vmatpush1.msra.mxu0 %v421
        %698 = vmatprep.subr.mxu0 0.0
        %699 = vmatpush2.msra.mxu0 %v452
        %700 = vmatprep.subr.mxu0 0.0
        %701 = vmatpush2.msra.mxu0 %v451
        %702 = vmatprep.subr.mxu0 0.0
        %703 = vmatpush2.msra.mxu0 %v450
        %704 = vmatprep.subr.mxu0 0.0
        %705 = vmatpush2.msra.mxu0 %v449
        %706 = vmatprep.subr.mxu0 0.0
        %707 = vmatpush2.msra.mxu0 %v448
        %708 = vmatprep.subr.mxu0 0.0
        %709 = vmatpush2.msra.mxu0 %v447
        %710 = vmatprep.subr.mxu0 0.0
        %711 = vmatpush2.msra.mxu0 %v446
        %712 = vmatprep.subr.mxu0 0.0
        %713 = vmatpush2.msra.mxu0 %v445
        %714 = vmatprep.subr.mxu0 0.0
        %715 = vmatpush2.msra.mxu0 %v444
        %716 = vmatprep.subr.mxu0 0.0
        %717 = vmatpush2.msra.mxu0 %v443
        %718 = vmatprep.subr.mxu0 0.0
        %719 = vmatpush2.msra.mxu0 %v442
        %720 = vmatprep.subr.mxu0 0.0
        %721 = vmatpush2.msra.mxu0 %v441
        %722 = vmatprep.subr.mxu0 0.0
        %723 = vmatpush2.msra.mxu0 %v440
        %724 = vmatprep.subr.mxu0 0.0
        %725 = vmatpush2.msra.mxu0 %v439
        %726 = vmatprep.subr.mxu0 0.0
        %727 = vmatpush2.msra.mxu0 %v438
        %728 = vmatprep.subr.mxu0 0.0
        %729 = vmatpush2.msra.mxu0 %v437
        %730 = vmatprep.mubr.f32.mxu0 %v664
        %731 = vmatmul.mubr.f32.gmra.mxu0 %v663
        %v732 = vpop.f32.mrf.mxu0
        %v733 = vadd.f32 0.0, %v732
        %v734 = vpop.f32.mrf.mxu0
        %735 = vdwg.mxu0
        %v736 = vrcp.pop %v665
        %v737 = vmul.f32 %v733, %v736
        %v738 = vadd.f32 %v599, %v737
        %739 = vst.msk [vmem:[%s215] sm:$0xff] %vm275, %v738
        %s740 = sand.u32 %s137, 1
        %s741 = scalar_lea.sflag [#allocation3], %s740
        %s742 = sand.u32 %s137, 1
        %s743 = smul.addr %s742, 8
        %s744 = scalar_lea.vmem [#allocation2], %s743
        // Predicated region
        $region41: #{skip_hashing_memory_forward.1} parent=39 // pred_check
          %p745 = pneg %p147
        $region42: #{skip_hashing_memory_forward.1} parent=39 // pred_check_branch
          %747 = sbr.rel (%p745) target = $region44
        $region43: #{skip_hashing_memory_forward.1} parent=39 // pred_region
          %s749 = ssub.s32 128, 128
          %750 = vsyncadd %s741, %s749
          %s751 = smul.addr %s19, 128
          %s752 = scalar_lea.hbm %s5, %s751
          %s754 = sshll.u32 %s744, 4
          %s755 = int_to_ptr.vmem [resolvable:$true] %s754
          %757 = dma.vmem_to_hbm [thread:$0]  %s755, 128, %s752, %s741
        $region44: #{skip_hashing_memory_forward.1} parent=39 // pred_fallthru
          _
      $region40: #{skip_hashing_memory_forward.1} parent=5 // pred_fallthru
        _
      %p758 = scmp.le.s32.totalorder 2, %s14
      // Predicated region
      $region45: #{skip_hashing_memory_forward.1} parent=5 // pred_check
        %p759 = pneg %p758
      $region46: #{skip_hashing_memory_forward.1} parent=5 // pred_check_branch
        %761 = sbr.rel (%p759) target = $region48
      $region47: #{skip_hashing_memory_forward.1} parent=5 // pred_region
        %s762 = ssub.s32 %s14, 2
        // Predicated region
        $region49: #{skip_hashing_memory_forward.1} parent=47 // pred_check
          %p763 = pneg %p153
        $region50: #{skip_hashing_memory_forward.1} parent=47 // pred_check_branch
          %765 = sbr.rel (%p763) target = $region52
        $region51: #{skip_hashing_memory_forward.1} parent=47 // pred_region
          %s766 = sand.u32 %s138, 1
          %s767 = scalar_lea.sflag [#allocation3], %s766
          %s768 = sand.u32 %s138, 1
          %s769 = smul.addr %s768, 8
          %s770 = scalar_lea.vmem [#allocation2], %s769
          %771 = dma.done %s767, 128
        $region52: #{skip_hashing_memory_forward.1} parent=47 // pred_fallthru
          _
      $region48: #{skip_hashing_memory_forward.1} parent=5 // pred_fallthru
        _
    $region6: #{skip_hashing_memory_forward.1} parent=1 // loop_footer
      %s18 = sadd.s32 1, %s14
    $region7: #{skip_hashing_memory_forward.1} parent=1 // loop_footer_branch
      %13 = sbr.rel target = $region3
    $region8: #{skip_hashing_memory_forward.1} parent=1 // loop_exit
      _
    %772 = vsyncpa [#allocation3], 1
    %s773 = scalar_lea.sflag [#allocation3], 1
    %774 = vsyncpa %s773, 1

</llo_original>
